<compile_context>
chip_gen: v5e
topology: v5e:2x2
jax: 0.10.0
libtpu: 0.0.40
codegen_flags: <defaults>
</compile_context>

<pallas_src>
import jax
import jax.numpy as jnp
from jax.experimental import pallas as pl
from jax.experimental.pallas import tpu as pltpu


def _sparse_conv_matmul_kernel(w_ref, mask_ref, b_ref, patches_ref, o_ref):
    """Fused RB-sparsifier + conv (per-batch lane-dense im2col matmul).

    w_ref:       (Cout, K)     flattened conv weight, K = Cin*kh*kw
    mask_ref:    (Cout, K)     RB sparsity mask parameter (same shape as weight)
    b_ref:       (Cout, 1)     bias
    patches_ref: (N, K, HW)    im2col patches, HW = Hout*Wout (lane-dense)
    o_ref:       (N, Cout, HW) conv output (lane-dense stores, contiguous NCHW)
    """
    # RBSparsifyingWeight (eval / frozen mode): binary mask = (mask > 0)
    binary_mask = (mask_ref[...] > 0.0).astype(w_ref.dtype)
    w_masked = w_ref[...] * binary_mask                      # VPU elementwise
    bias = b_ref[...]                                        # (Cout, 1)
    # Static per-batch loop (N is tiny).  Leading-axis indexing is a view, so
    # no cross-lane-tile slicing; each (Cout,K)@(K,HW) is one MXU pass and the
    # store is a full-width lane-dense vst.
    for n in range(patches_ref.shape[0]):
        acc = jnp.dot(w_masked, patches_ref[n],
                      preferred_element_type=jnp.float32)    # (Cout, HW)
        o_ref[n] = (acc + bias).astype(o_ref.dtype)


def sparse_conv2d(x, weight, mask, bias):
    """TestModel.forward: conv2d with RB-sparsified weight (stride 1, no padding)."""
    N, C, H, W = x.shape
    Cout, Cin, kh, kw = weight.shape
    assert Cin == C
    Hout, Wout = H - kh + 1, W - kw + 1
    K = Cin * kh * kw
    HW = Hout * Wout

    # im2col in ONE XLA op.  Output feature ordering is input-channel-major,
    # kernel-spatial row-major -> matches weight.reshape(Cout, Cin*kh*kw).
    patches = jax.lax.conv_general_dilated_patches(
        x, filter_shape=(kh, kw), window_strides=(1, 1), padding="VALID",
        dimension_numbers=("NCHW", "OIHW", "NCHW"))          # (N, K, Hout, Wout)
    # Contiguous view -- no transpose, no extra HBM round trip.
    patches3 = patches.reshape(N, K, HW)                     # (N, K, HW)

    w2d = weight.reshape(Cout, K)
    m2d = mask.reshape(Cout, K)
    b2d = bias.reshape(Cout, 1)

    vmem = pl.BlockSpec(memory_space=pltpu.MemorySpace.VMEM)
    out = pl.pallas_call(
        _sparse_conv_matmul_kernel,
        out_shape=jax.ShapeDtypeStruct((N, Cout, HW), x.dtype),
        # Single-invocation kernel: whole arrays live in VMEM, no grid/pipelining
        # (total footprint is a few hundred KB).
        # Note: if Cout/HW ever scale up, add an HW-tiled "parallel" grid axis
        # with tiles that are multiples of 128 lanes, sized against v7x's
        # 64 MiB VMEM (32 MiB default scoped limit; inputs double-buffer 2x).
        in_specs=[vmem, vmem, vmem, vmem],
        out_specs=vmem,
        cost_estimate=pl.CostEstimate(
            flops=2 * N * Cout * K * HW,
            bytes_accessed=4 * (2 * Cout * K + Cout + N * K * HW + N * Cout * HW),
            transcendentals=0),
    )(w2d, m2d, b2d, patches3)                               # (N, Cout, HW)

    # Contiguous reshape only -- no transpose.
    return out.reshape(N, Cout, Hout, Wout)


if __name__ == "__main__":
    key = jax.random.PRNGKey(0)
    k_x, k_w, k_b, k_m = jax.random.split(key, 4)

    # layer = nn.Conv2d(4, 8, kernel_size=3)   (stride=1, padding=0)
    N, Cin, H, W = 2, 4, 16, 16
    Cout, kh, kw = 8, 3, 3

    x = jax.random.normal(k_x, (N, Cin, H, W), dtype=jnp.float32)
    weight = jax.random.normal(k_w, (Cout, Cin, kh, kw), dtype=jnp.float32) * 0.1
    bias = jax.random.normal(k_b, (Cout,), dtype=jnp.float32) * 0.1
    # RBSparsifyingWeight mask parameter (same shape as weight); random sign so
    # the binary mask actually zeros ~half the weights.
    mask = jax.random.normal(k_m, (Cout, Cin, kh, kw), dtype=jnp.float32)

    fwd = jax.jit(sparse_conv2d)
    y = jax.block_until_ready(fwd(x, weight, mask, bias))

    # Regression cross-check against XLA conv reference with the same masked
    # weight (also guards the im2col feature-ordering contract).
    w_masked = weight * (mask > 0).astype(weight.dtype)
    y_ref = jax.lax.conv_general_dilated(
        x, w_masked, window_strides=(1, 1), padding="VALID",
        dimension_numbers=("NCHW", "OIHW", "NCHW")) + bias.reshape(1, Cout, 1, 1)
    assert y.shape == (N, Cout, H - kh + 1, W - kw + 1)
    assert jnp.allclose(y, y_ref, atol=1e-4, rtol=1e-4)

    print("KERNEL_OK")
</pallas_src>

<mosaic_0001>
module attributes {stable_mosaic.version = 11 : i64} {
  func.func @_sparse_conv_matmul_kernel(%arg0: memref<8x36xf32, #tpu.memory_space<vmem>>, %arg1: memref<8x36xf32, #tpu.memory_space<vmem>>, %arg2: memref<8x1xf32, #tpu.memory_space<vmem>>, %arg3: memref<2x36x196xf32, #tpu.memory_space<vmem>>, %arg4: memref<2x8x196xf32, #tpu.memory_space<vmem>>) attributes {dimension_semantics = [], scalar_prefetch = 0 : i64, scratch_operands = 0 : i64, tpu.core_type = #tpu.core_type<tc>} {
    %c0 = arith.constant 0 : index
    %c0_0 = arith.constant 0 : index
    %0 = vector.load %arg1[%c0, %c0_0] : memref<8x36xf32, #tpu.memory_space<vmem>>, vector<8x36xf32>
    %cst = arith.constant 0.000000e+00 : f32
    %1 = vector.broadcast %cst : f32 to vector<8x36xf32>
    %2 = arith.cmpf ogt, %0, %1 : vector<8x36xf32>
    %3 = arith.extui %2 : vector<8x36xi1> to vector<8x36xi32>
    %4 = arith.sitofp %3 : vector<8x36xi32> to vector<8x36xf32>
    %c0_1 = arith.constant 0 : index
    %c0_2 = arith.constant 0 : index
    %5 = vector.load %arg0[%c0_1, %c0_2] : memref<8x36xf32, #tpu.memory_space<vmem>>, vector<8x36xf32>
    %6 = arith.mulf %5, %4 : vector<8x36xf32>
    %c0_3 = arith.constant 0 : index
    %c0_4 = arith.constant 0 : index
    %7 = vector.load %arg2[%c0_3, %c0_4] : memref<8x1xf32, #tpu.memory_space<vmem>>, vector<8x1xf32>
    %c0_5 = arith.constant 0 : index
    %c0_6 = arith.constant 0 : index
    %c0_7 = arith.constant 0 : index
    %8 = vector.load %arg3[%c0_5, %c0_6, %c0_7] : memref<2x36x196xf32, #tpu.memory_space<vmem>>, vector<1x36x196xf32>
    %9 = vector.shape_cast %8 : vector<1x36x196xf32> to vector<36x196xf32>
    %cst_8 = arith.constant dense<0.000000e+00> : vector<8x196xf32>
    %10 = tpu.matmul %6, %9, %cst_8 {dimension_numbers = #tpu.dot_dimension_numbers<[1], [0], [0], [1], [0, 0, 1, 1], [], []>} : vector<8x36xf32>, vector<36x196xf32>, vector<8x196xf32> -> vector<8x196xf32>
    %11 = vector.broadcast %7 : vector<8x1xf32> to vector<8x196xf32>
    %12 = arith.addf %10, %11 : vector<8x196xf32>
    %c0_9 = arith.constant 0 : index
    %c0_10 = arith.constant 0 : index
    %c0_11 = arith.constant 0 : index
    %13 = vector.load %arg4[%c0_9, %c0_10, %c0_11] : memref<2x8x196xf32, #tpu.memory_space<vmem>>, vector<1x8x196xf32>
    %14 = vector.shape_cast %13 : vector<1x8x196xf32> to vector<8x196xf32>
    %15 = vector.shape_cast %12 : vector<8x196xf32> to vector<1x8x196xf32>
    tpu.vector_store %arg4[%c0_9, %c0_10, %c0_11], %15 {strides = array<i32>} : memref<2x8x196xf32, #tpu.memory_space<vmem>>, vector<1x8x196xf32>,
    %c1 = arith.constant 1 : index
    %c0_12 = arith.constant 0 : index
    %c0_13 = arith.constant 0 : index
    %16 = vector.load %arg3[%c1, %c0_12, %c0_13] : memref<2x36x196xf32, #tpu.memory_space<vmem>>, vector<1x36x196xf32>
    %17 = vector.shape_cast %16 : vector<1x36x196xf32> to vector<36x196xf32>
    %cst_14 = arith.constant dense<0.000000e+00> : vector<8x196xf32>
    %18 = tpu.matmul %6, %17, %cst_14 {dimension_numbers = #tpu.dot_dimension_numbers<[1], [0], [0], [1], [0, 0, 1, 1], [], []>} : vector<8x36xf32>, vector<36x196xf32>, vector<8x196xf32> -> vector<8x196xf32>
    %19 = vector.broadcast %7 : vector<8x1xf32> to vector<8x196xf32>
    %20 = arith.addf %18, %19 : vector<8x196xf32>
    %c1_15 = arith.constant 1 : index
    %c0_16 = arith.constant 0 : index
    %c0_17 = arith.constant 0 : index
    %21 = vector.load %arg4[%c1_15, %c0_16, %c0_17] : memref<2x8x196xf32, #tpu.memory_space<vmem>>, vector<1x8x196xf32>
    %22 = vector.shape_cast %21 : vector<1x8x196xf32> to vector<8x196xf32>
    %23 = vector.shape_cast %20 : vector<8x196xf32> to vector<1x8x196xf32>
    tpu.vector_store %arg4[%c1_15, %c0_16, %c0_17], %23 {strides = array<i32>} : memref<2x8x196xf32, #tpu.memory_space<vmem>>, vector<1x8x196xf32>,
    return
  }
}

</mosaic_0001>

<llo_original>
// kernel: sparse_conv2d.1
$region0: #{sparse_conv2d.1}
  #allocation0 [shape = 'u32[]', space=smem, size = 0x4, offset = 0x4, fixed_abs, tag = 'smem constant byte address 0x4 - core index']
  #allocation1 [shape = 'u32[72,128]{1,0:T(1,128)}', space=vmem, size = 0x9000, scoped, tag = 'internal scratch']
  %s0 = inlined_call_operand.vmem [shape: f32[8,36], index: 0, kind: input, shape index: {}]
  %s1 = inlined_call_operand.vmem [shape: f32[8,36], index: 1, kind: input, shape index: {}]
  %s2 = inlined_call_operand.vmem [shape: f32[8,1], index: 2, kind: input, shape index: {}]
  %s3 = inlined_call_operand.vmem [shape: f32[2,36,196], index: 3, kind: input, shape index: {}]
  %s4 = inlined_call_operand.vmem [shape: f32[2,8,196], index: 4, kind: output, shape index: {}]
  %s5 = sld [smem:[#allocation0]]
  $region26: #{sparse_conv2d.1} parent=0
    _
  %s7 = ssub.s32 1, %s5
  %s8 = scalar_select 0, %s7, %s5
  // Predicated region
  $region2: #{sparse_conv2d.1} parent=0 // pred_check
    _
  $region3: #{sparse_conv2d.1} parent=0 // pred_check_branch
    %10 = sbr.rel (0) target = $region5
  $region4: #{sparse_conv2d.1} parent=0 // pred_region
    _
  $region5: #{sparse_conv2d.1} parent=0 // pred_fallthru
    _
  // Predicated region
  $region6: #{sparse_conv2d.1} parent=0 // pred_check
    _
  $region7: #{sparse_conv2d.1} parent=0 // pred_check_branch
    %12 = sbr.rel (0) target = $region9
  $region8: #{sparse_conv2d.1} parent=0 // pred_region
    _
  $region9: #{sparse_conv2d.1} parent=0 // pred_fallthru
    _
  // Predicated region
  $region10: #{sparse_conv2d.1} parent=0 // pred_check
    _
  $region11: #{sparse_conv2d.1} parent=0 // pred_check_branch
    %14 = sbr.rel (0) target = $region13
  $region12: #{sparse_conv2d.1} parent=0 // pred_region
    _
  $region13: #{sparse_conv2d.1} parent=0 // pred_fallthru
    _
  // Predicated region
  $region14: #{sparse_conv2d.1} parent=0 // pred_check
    _
  $region15: #{sparse_conv2d.1} parent=0 // pred_check_branch
    %16 = sbr.rel (0) target = $region17
  $region16: #{sparse_conv2d.1} parent=0 // pred_region
    _
  $region17: #{sparse_conv2d.1} parent=0 // pred_fallthru
    _
  %v17 = vld [vmem:[%s1] sm:$0xff]
  %vm18 = vcmp.gt.f32.partialorder %v17, 0.0
  %v19 = vsel %vm18, 1, 0
  %v20 = vcvt.s32.f32 %v19
  %v21 = vld [vmem:[%s0] sm:$0xff]
  %v22 = vmul.f32 %v21, %v20
  %v23 = vld [vmem:[%s2] sm:$0xff]
  %v24 = vld [vmem:[%s3] sm:$0xff]
  %v25 = vld [vmem:[%s3 + $0x8] sm:$0xff]
  %v26 = vld [vmem:[%s3 + $0x10] sm:$0xff]
  %v27 = vld [vmem:[%s3 + $0x18] sm:$0xff]
  %v28 = vld [vmem:[%s3 + $0x20] sm:$0xff]
  %v29 = vld [vmem:[%s3 + $0x28] sm:$0xff]
  %v30 = vld [vmem:[%s3 + $0x30] sm:$0xff]
  %v31 = vld [vmem:[%s3 + $0x38] sm:$0xff]
  %v32 = vld [vmem:[%s3 + $0x40] sm:$0xf]
  %v33 = vld [vmem:[%s3 + $0x48] sm:$0xf]
  %35 = vset.pattern.permute.xlu0 0
  %36 = vperm.xlu0 %35, %v23
  %v37 = vpop.permute.xlu0 %36
  %vm39 = vcmask 293888
  %v41 = vsel %vm39, %v22, 0
  %vm43 = vcmask 1043456
  %v45 = vsel %vm43, %v32, 0
  %v48 = vsel %vm43, %v33, 0
  %50 = vmatpush.msra.mxu0 0.0
  %51 = vmatpush.msra.mxu0 0.0
  %52 = vmatpush.msra.mxu0 0.0
  %53 = vmatpush.msra.mxu0 0.0
  %54 = vmatpush.msra.mxu0 0.0
  %55 = vmatpush.msra.mxu0 0.0
  %56 = vmatpush.msra.mxu0 0.0
  %57 = vmatpush.msra.mxu0 0.0
  %58 = vmatpush.msra.mxu0 0.0
  %59 = vmatpush.msra.mxu0 0.0
  %60 = vmatpush.msra.mxu0 0.0
  %61 = vmatpush.msra.mxu0 %v45
  %62 = vmatpush.msra.mxu0 %v30
  %63 = vmatpush.msra.mxu0 %v28
  %64 = vmatpush.msra.mxu0 %v26
  %65 = vmatpush.msra.mxu0 %v24
  %66 = vmatmul.f32.gmra.mxu0 %v41
  %v67 = vpop.f32.mrf.mxu0
  %v68 = vadd.f32 %v37, %v67
  %69 = vdwg.mxu0
  %70 = vmatpush.msra.mxu0 0.0
  %71 = vmatpush.msra.mxu0 0.0
  %72 = vmatpush.msra.mxu0 0.0
  %73 = vmatpush.msra.mxu0 0.0
  %74 = vmatpush.msra.mxu0 0.0
  %75 = vmatpush.msra.mxu0 0.0
  %76 = vmatpush.msra.mxu0 0.0
  %77 = vmatpush.msra.mxu0 0.0
  %78 = vmatpush.msra.mxu0 0.0
  %79 = vmatpush.msra.mxu0 0.0
  %80 = vmatpush.msra.mxu0 0.0
  %81 = vmatpush.msra.mxu0 %v48
  %82 = vmatpush.msra.mxu0 %v31
  %83 = vmatpush.msra.mxu0 %v29
  %84 = vmatpush.msra.mxu0 %v27
  %85 = vmatpush.msra.mxu0 %v25
  %86 = vmatmul.f32.gmra.mxu0 %v41
  %v87 = vpop.f32.mrf.mxu0
  %v88 = vadd.f32 %v37, %v87
  %89 = vdwg.mxu0
  %90 = vst [vmem:[%s4] sm:$0xff] %v68
  %vm91 = vcmask 556032
  %92 = vst.msk [vmem:[%s4 + $0x8] sm:$0xff] %vm91, %v88
  %s93 = scalar_lea.vmem %s3, 80
  %v94 = vld [vmem:[%s93] sm:$0xff]
  %v95 = vld [vmem:[%s93 + $0x8] sm:$0xff]
  %v96 = vld [vmem:[%s93 + $0x10] sm:$0xff]
  %v97 = vld [vmem:[%s93 + $0x18] sm:$0xff]
  %v98 = vld [vmem:[%s93 + $0x20] sm:$0xff]
  %v99 = vld [vmem:[%s93 + $0x28] sm:$0xff]
  %v100 = vld [vmem:[%s93 + $0x30] sm:$0xff]
  %v101 = vld [vmem:[%s93 + $0x38] sm:$0xff]
  %v102 = vld [vmem:[%s93 + $0x40] sm:$0xf]
  %v103 = vld [vmem:[%s93 + $0x48] sm:$0xf]
  %v105 = vsel %vm43, %v102, 0
  %v108 = vsel %vm43, %v103, 0
  %110 = vmatpush.msra.mxu0 0.0
  %111 = vmatpush.msra.mxu0 0.0
  %112 = vmatpush.msra.mxu0 0.0
  %113 = vmatpush.msra.mxu0 0.0
  %114 = vmatpush.msra.mxu0 0.0
  %115 = vmatpush.msra.mxu0 0.0
  %116 = vmatpush.msra.mxu0 0.0
  %117 = vmatpush.msra.mxu0 0.0
  %118 = vmatpush.msra.mxu0 0.0
  %119 = vmatpush.msra.mxu0 0.0
  %120 = vmatpush.msra.mxu0 0.0
  %121 = vmatpush.msra.mxu0 %v105
  %122 = vmatpush.msra.mxu0 %v100
  %123 = vmatpush.msra.mxu0 %v98
  %124 = vmatpush.msra.mxu0 %v96
  %125 = vmatpush.msra.mxu0 %v94
  %126 = vmatmul.f32.gmra.mxu0 %v41
  %v127 = vpop.f32.mrf.mxu0
  %v128 = vadd.f32 %v37, %v127
  %129 = vdwg.mxu0
  %130 = vmatpush.msra.mxu0 0.0
  %131 = vmatpush.msra.mxu0 0.0
  %132 = vmatpush.msra.mxu0 0.0
  %133 = vmatpush.msra.mxu0 0.0
  %134 = vmatpush.msra.mxu0 0.0
  %135 = vmatpush.msra.mxu0 0.0
  %136 = vmatpush.msra.mxu0 0.0
  %137 = vmatpush.msra.mxu0 0.0
  %138 = vmatpush.msra.mxu0 0.0
  %139 = vmatpush.msra.mxu0 0.0
  %140 = vmatpush.msra.mxu0 0.0
  %141 = vmatpush.msra.mxu0 %v108
  %142 = vmatpush.msra.mxu0 %v101
  %143 = vmatpush.msra.mxu0 %v99
  %144 = vmatpush.msra.mxu0 %v97
  %145 = vmatpush.msra.mxu0 %v95
  %146 = vmatmul.f32.gmra.mxu0 %v41
  %v147 = vpop.f32.mrf.mxu0
  %v148 = vadd.f32 %v37, %v147
  %149 = vdwg.mxu0
  %s150 = scalar_lea.vmem %s4, 16
  %151 = vst [vmem:[%s150] sm:$0xff] %v128
  %152 = vst.msk [vmem:[%s150 + $0x8] sm:$0xff] %vm91, %v148
  // Predicated region
  $region18: #{sparse_conv2d.1} parent=0 // pred_check
    _
  $region19: #{sparse_conv2d.1} parent=0 // pred_check_branch
    %154 = sbr.rel (0) target = $region21
  $region20: #{sparse_conv2d.1} parent=0 // pred_region
    _
  $region21: #{sparse_conv2d.1} parent=0 // pred_fallthru
    _
  // Predicated region
  $region22: #{sparse_conv2d.1} parent=0 // pred_check
    _
  $region23: #{sparse_conv2d.1} parent=0 // pred_check_branch
    %156 = sbr.rel (0) target = $region25
  $region24: #{sparse_conv2d.1} parent=0 // pred_region
    _
  $region25: #{sparse_conv2d.1} parent=0 // pred_fallthru
    _

</llo_original>
